<compile_context>
chip_gen: v5e
topology: v5e:2x2
jax: 0.10.0
libtpu: 0.0.40
codegen_flags: <defaults>
</compile_context>

<pallas_src>
import functools
import math

import jax
import jax.numpy as jnp
from jax.experimental import pallas as pl
from jax.experimental.pallas import tpu as pltpu


# ---------------------------------------------------------------------------
# helpers
# ---------------------------------------------------------------------------
def _round_up(x, m):
    return ((x + m - 1) // m) * m


def _pad2d(a, rows, cols):
    r, c = a.shape
    if r == rows and c == cols:
        return a
    return jnp.pad(a, ((0, rows - r), (0, cols - c)))


@functools.lru_cache(maxsize=None)
def _vmem_capacity_bytes():
    """Physical per-core VMEM; conservative fallback if the query fails."""
    try:
        return int(pltpu.get_tpu_info().vmem_capacity_bytes)
    except Exception:
        return 64 * 1024 * 1024   # assume the smallest (v7x per-TC) budget


@functools.lru_cache(maxsize=None)
def _vmem_budget_bytes():
    """Scoped-VMEM limit to request, leaving headroom for Mosaic scratch."""
    cap = _vmem_capacity_bytes()
    if cap >= 100 * 1024 * 1024:          # v5e / v6e: 128 MiB physical
        return 100 * 1024 * 1024
    return 52 * 1024 * 1024               # v7x: 64 MiB per TensorCore


def _pick_tile(dim, cap=512):
    """Largest (8,128)-friendly tile <= cap that divides dim."""
    for t in (512, 384, 256, 128, 64, 32, 16, 8):
        if t <= cap and dim % t == 0:
            return t
    return min(dim, cap)


def _pick_batch_tiling(B, tm_cap=512):
    """Choose (tm, B_pad): minimize padded rows, keep >=2 grid steps when the
    batch allows (megacore sharding on v7x), penalize tiny tiles (per-step
    overhead ~0.35us)."""
    B8 = _round_up(B, 8)
    if B8 <= 16:
        return B8, B8                      # tiny batch: one tile
    best = None                            # (score, -tm, tm, B_pad)
    for tm in range(8, min(tm_cap, B8) + 1, 8):
        n = -(-B8 // tm)
        if n < 2:
            continue                       # prefer >= 2 grid steps
        b_pad = n * tm
        score = b_pad + 64 * n             # padded rows + per-step overhead
        key = (score, -tm)
        if best is None or key < best[:2][0:2][0:2] and False:
            pass
        if best is None or key < (best[0], best[1]):
            best = (score, -tm, tm, b_pad)
    if best is None:
        return B8, B8
    return best[2], best[3]


# ---------------------------------------------------------------------------
# Fused MLP kernel: whole network in one kernel, weights resident in VMEM
# ---------------------------------------------------------------------------
def _fused_mlp_kernel(*refs, relu_flags):
    # refs = (x_ref, w0, b0, w1, b1, ..., o_ref)
    x_ref, o_ref = refs[0], refs[-1]
    h = x_ref[...]
    for l, relu in enumerate(relu_flags):
        w_ref = refs[1 + 2 * l]
        b_ref = refs[2 + 2 * l]
        # bf16 operands -> MXU, f32 accumulation; f32 bias add.
        h = jnp.dot(h.astype(w_ref.dtype), w_ref[...],
                    preferred_element_type=jnp.float32) + b_ref[...]
        if relu:
            h = jnp.maximum(h, 0.0)
    o_ref[...] = h.astype(o_ref.dtype)


def _mlp_fused(x_pad, padded_params, relu_flags, tm):
    B_pad, Din_pad = x_pad.shape
    Dout_pad = padded_params[-1][0].shape[1]
    vmem_limit = _vmem_budget_bytes()

    def build(single_buffer_resident):
        inputs = [x_pad]
        in_specs = [pl.BlockSpec((tm, Din_pad), lambda i: (i, 0))]
        for (w, b2d) in padded_params:
            din_p, dout_p = w.shape
            inputs += [w, b2d]
            if single_buffer_resident:
                # constant index_map => the block never changes; single buffer
                in_specs += [
                    pl.BlockSpec((din_p, dout_p), lambda i: (0, 0),
                                 pipeline_mode=pl.Buffered(1)),
                    pl.BlockSpec((1, dout_p), lambda i: (0, 0),
                                 pipeline_mode=pl.Buffered(1)),
                ]
            else:
                in_specs += [
                    pl.BlockSpec((din_p, dout_p), lambda i: (0, 0)),
                    pl.BlockSpec((1, dout_p), lambda i: (0, 0)),
                ]

        kernel = functools.partial(_fused_mlp_kernel, relu_flags=relu_flags)
        return pl.pallas_call(
            kernel,
            out_shape=jax.ShapeDtypeStruct((B_pad, Dout_pad), jnp.float32),
            grid_spec=pltpu.PrefetchScalarGridSpec(
                num_scalar_prefetch=0,
                grid=(B_pad // tm,),
                in_specs=in_specs,
                out_specs=pl.BlockSpec((tm, Dout_pad), lambda i: (i, 0)),
            ),
            compiler_params=pltpu.CompilerParams(
                dimension_semantics=("parallel",),     # batch shards over TCs
                vmem_limit_bytes=vmem_limit,
            ),
        )(*inputs)

    try:
        return build(True)
    except Exception:
        # pipeline_mode=pl.Buffered(1) unsupported on this jax/libtpu combo:
        # fall back to default (double-buffered) resident specs.
        return build(False)


def _fused_fits(padded_params, tm, din_pad, dout_pad):
    """Rough VMEM residency estimate for the fused kernel (bf16, Buffered(1))."""
    budget = _vmem_budget_bytes()
    w_bytes = sum(int(w.size) * w.dtype.itemsize + int(b.size) * b.dtype.itemsize
                  for w, b in padded_params)
    x_item = padded_params[0][0].dtype.itemsize
    io_bytes = 2 * tm * din_pad * x_item + 2 * tm * dout_pad * 4   # streamed x / out
    max_w = max([padded_params[0][0].shape[0]] +
                [w.shape[1] for w, _ in padded_params])
    act_bytes = tm * max_w * (4 + x_item)                           # live activation
    return w_bytes + io_bytes + act_bytes <= int(0.75 * budget)


# ---------------------------------------------------------------------------
# Tiled Linear(+ReLU) kernel: fallback path for weights that don't fit VMEM
# ---------------------------------------------------------------------------
def _linear_tiled_kernel(x_ref, w_ref, b_ref, o_ref, acc_ref, *, apply_relu):
    @pl.when(pl.program_id(2) == 0)
    def _():
        acc_ref[...] = jnp.zeros_like(acc_ref)

    acc_ref[...] += jnp.dot(x_ref[...], w_ref[...],
                            preferred_element_type=jnp.float32)

    @pl.when(pl.program_id(2) == pl.num_programs(2) - 1)
    def _():
        y = acc_ref[...] + b_ref[...]
        if apply_relu:
            y = jnp.maximum(y, 0.0)
        o_ref[...] = y.astype(o_ref.dtype)


def linear_tiled(x, w, b2d, *, apply_relu, out_dtype=None):
    """y = (relu)(x @ w + b).  Dims must be (8,128)-friendly (pre-padded)."""
    M, K = x.shape
    K2, N = w.shape
    assert K == K2 and b2d.shape == (1, N)
    out_dtype = out_dtype or x.dtype
    # 256-512 tiles when dims allow: ~85% of HBM roofline vs ~29% at 128.
    tm = _pick_tile(M, 512)
    tn = _pick_tile(N, 512)
    tk = _pick_tile(K, 512)
    assert M % tm == 0 and N % tn == 0 and K % tk == 0, (
        "linear_tiled requires pre-padded (8,128)-friendly shapes")

    kernel = functools.partial(_linear_tiled_kernel, apply_relu=apply_relu)
    return pl.pallas_call(
        kernel,
        out_shape=jax.ShapeDtypeStruct((M, N), out_dtype),
        grid_spec=pltpu.PrefetchScalarGridSpec(
            num_scalar_prefetch=0,
            grid=(M // tm, N // tn, K // tk),
            in_specs=[
                pl.BlockSpec((tm, tk), lambda i, j, k: (i, k)),
                pl.BlockSpec((tk, tn), lambda i, j, k: (k, j)),
                pl.BlockSpec((1, tn), lambda i, j, k: (0, j)),
            ],
            out_specs=pl.BlockSpec((tm, tn), lambda i, j, k: (i, j)),
            scratch_shapes=[pltpu.VMEM((tm, tn), jnp.float32)],
        ),
        compiler_params=pltpu.CompilerParams(
            dimension_semantics=("parallel", "parallel", "arbitrary"),
            vmem_limit_bytes=_vmem_budget_bytes(),
        ),
    )(x, w, b2d)


# ---------------------------------------------------------------------------
# Parameter init (xavier-uniform, zero bias — like the torch module) and
# one-time preparation (pad to lane-dense shapes, reshape bias, bf16 cast).
# All hoisted out of the forward path.
# ---------------------------------------------------------------------------
def init_mlp_params(key, in_size, layer_sizes, out_size):
    sizes = [in_size] + list(layer_sizes)
    params = []
    for i in range(len(sizes) - 1):
        key, sub = jax.random.split(key)
        fan_in, fan_out = sizes[i], sizes[i + 1]
        limit = math.sqrt(6.0 / (fan_in + fan_out))
        w = jax.random.uniform(sub, (fan_in, fan_out), jnp.float32, -limit, limit)
        b = jnp.zeros((fan_out,), jnp.float32)
        params.append((w, b))
    pred = None
    if out_size:
        key, sub = jax.random.split(key)
        fan_in, fan_out = sizes[-1], out_size
        limit = math.sqrt(6.0 / (fan_in + fan_out))
        w = jax.random.uniform(sub, (fan_in, fan_out), jnp.float32, -limit, limit)
        b = jnp.zeros((fan_out,), jnp.float32)
        pred = (w, b)
    return params, pred


def prepare_mlp_params(params, pred, compute_dtype=jnp.bfloat16):
    """Pad every (in,out) weight to multiples of 128 with zeros (exact), cast
    to the MXU-native compute dtype (bf16 default), build (1, out_pad) f32
    biases, record which layers get ReLU (hidden yes, head no)."""
    layers = list(params) + ([pred] if pred is not None else [])
    relu_flags = tuple([True] * len(params) + ([False] if pred is not None else []))
    final_dim = layers[-1][0].shape[1]
    padded = []
    for (w, b) in layers:
        din, dout = w.shape
        din_p, dout_p = _round_up(din, 128), _round_up(dout, 128)
        wp = _pad2d(w, din_p, dout_p).astype(compute_dtype)
        bp = _pad2d(b.reshape(1, -1).astype(jnp.float32), 1, dout_p)
        padded.append((wp, bp))
    return padded, relu_flags, final_dim


# ---------------------------------------------------------------------------
# Forward pass (mirrors MultiLayerPerceptron.forward with is_policy=False)
# ---------------------------------------------------------------------------
def mlp_forward(x, padded_params, relu_flags, final_dim, *, reshape=True,
                force_tiled=False):
    if reshape:
        x = x.reshape(x.shape[0], -1)
    x = x.astype(jnp.float32)                  # mirrors torch x.float()
    B = x.shape[0]

    compute_dtype = padded_params[0][0].dtype
    Din_pad = padded_params[0][0].shape[0]
    Dout_pad = padded_params[-1][0].shape[1]

    # Cap tm when layers are wide: (tm x width) f32 live activation must not
    # blow the 64x4KiB vreg file into heavy VMEM spilling.
    max_w = max([Din_pad] + [w.shape[1] for w, _ in padded_params])
    if max_w >= 2048:
        tm_cap = 64
    elif max_w >= 1024:
        tm_cap = 128
    elif max_w >= 512:
        tm_cap = 256
    else:
        tm_cap = 512
    tm, B_pad = _pick_batch_tiling(B, tm_cap)

    x_pad = _pad2d(x, B_pad, Din_pad).astype(compute_dtype)

    if (not force_tiled) and _fused_fits(padded_params, tm, Din_pad, Dout_pad):
        # whole MLP in one kernel, weights resident in VMEM
        out_pad = _mlp_fused(x_pad, padded_params, relu_flags, tm)
    else:
        # layer-by-layer tiled matmuls (weights streamed, f32 accumulation)
        h = x_pad
        n = len(padded_params)
        for idx, ((w, b2d), relu) in enumerate(zip(padded_params, relu_flags)):
            last = idx == n - 1
            h = linear_tiled(h, w, b2d, apply_relu=relu,
                             out_dtype=jnp.float32 if last else w.dtype)
        out_pad = h

    return out_pad[:B, :final_dim]


# ---------------------------------------------------------------------------
if __name__ == "__main__":
    key = jax.random.PRNGKey(0)
    key, xk = jax.random.split(key)

    # small input: batch=2, flattened feature size = 4*16 = 64
    x = jax.random.normal(xk, (2, 4, 16), jnp.float32)

    in_size = 4 * 16
    layer_sizes = [64, 64]     # default in the torch module
    out_size = 32

    params, pred = init_mlp_params(key, in_size, layer_sizes, out_size)
    padded_params, relu_flags, final_dim = prepare_mlp_params(params, pred)  # bf16

    # fused single-kernel path
    out = mlp_forward(x, padded_params, relu_flags, final_dim, reshape=True)
    out = jax.block_until_ready(out)
    assert out.shape == (2, out_size)

    # references: (a) emulating the kernel's bf16-matmul / f32-accumulate
    # compute; (b) pure f32 (accuracy-tradeoff sanity check)
    def ref_forward(x2d, compute_dtype):
        h = x2d.astype(jnp.float32).astype(compute_dtype)
        for (w, b) in params:
            h = jnp.maximum(jnp.dot(h, w.astype(compute_dtype),
                                    preferred_element_type=jnp.float32) + b, 0.0)
            h = h.astype(compute_dtype)
        return jnp.dot(h, pred[0].astype(compute_dtype),
                       preferred_element_type=jnp.float32) + pred[1]

    x2d = x.reshape(x.shape[0], -1)
    ref_bf16 = ref_forward(x2d, jnp.bfloat16)
    ref_f32 = ref_forward(x2d, jnp.float32)
    assert jnp.allclose(out, ref_bf16, atol=1e-2, rtol=1e-2)
    assert jnp.allclose(out, ref_f32, atol=6e-2, rtol=6e-2)

    # forced tiled fallback path must also match
    out_tiled = mlp_forward(x, padded_params, relu_flags, final_dim,
                            reshape=True, force_tiled=True)
    out_tiled = jax.block_until_ready(out_tiled)
    assert jnp.allclose(out_tiled, ref_bf16, atol=1e-2, rtol=1e-2)

    # standalone tiled linear at non-toy, multiple-of-128 shapes (f32 path)
    k1, k2, k3 = jax.random.split(key, 3)
    xb = jax.random.normal(k1, (256, 384), jnp.float32)
    wb = jax.random.normal(k2, (384, 256), jnp.float32) * 0.05
    bb = jax.random.normal(k3, (256,), jnp.float32)
    yb = linear_tiled(xb, wb, bb.reshape(1, -1), apply_relu=True)
    yb = jax.block_until_ready(yb)
    ref_b = jnp.maximum(xb @ wb + bb, 0.0)
    assert jnp.allclose(yb, ref_b, atol=1e-3, rtol=1e-4)

    print("KERNEL_OK")
</pallas_src>

<mosaic_0001>
module attributes {stable_mosaic.version = 11 : i64} {
  func.func @_fused_mlp_kernel(%arg0: i32, %arg1: memref<8x128xbf16, #tpu.memory_space<vmem>>, %arg2: memref<128x128xbf16, #tpu.memory_space<vmem>>, %arg3: memref<1x128xf32, #tpu.memory_space<vmem>>, %arg4: memref<128x128xbf16, #tpu.memory_space<vmem>>, %arg5: memref<1x128xf32, #tpu.memory_space<vmem>>, %arg6: memref<128x128xbf16, #tpu.memory_space<vmem>>, %arg7: memref<1x128xf32, #tpu.memory_space<vmem>>, %arg8: memref<8x128xf32, #tpu.memory_space<vmem>>) attributes {dimension_semantics = [#tpu.dimension_semantics<parallel>], iteration_bounds = array<i64: 1>, scalar_prefetch = 0 : i64, scratch_operands = 0 : i64, tpu.core_type = #tpu.core_type<tc>, window_params = [{transform_indices = @transform_0, window_bounds = array<i64: 8, 128>}, {pipeline_mode = #tpu.pipeline_mode<synchronous>, transform_indices = @transform_1, window_bounds = array<i64: 128, 128>}, {pipeline_mode = #tpu.pipeline_mode<synchronous>, transform_indices = @transform_2, window_bounds = array<i64: 1, 128>}, {pipeline_mode = #tpu.pipeline_mode<synchronous>, transform_indices = @transform_3, window_bounds = array<i64: 128, 128>}, {pipeline_mode = #tpu.pipeline_mode<synchronous>, transform_indices = @transform_4, window_bounds = array<i64: 1, 128>}, {pipeline_mode = #tpu.pipeline_mode<synchronous>, transform_indices = @transform_5, window_bounds = array<i64: 128, 128>}, {pipeline_mode = #tpu.pipeline_mode<synchronous>, transform_indices = @transform_6, window_bounds = array<i64: 1, 128>}, {transform_indices = @transform_7, window_bounds = array<i64: 8, 128>}]} {
    %c0 = arith.constant 0 : index
    %c0_0 = arith.constant 0 : index
    %0 = vector.load %arg1[%c0, %c0_0] : memref<8x128xbf16, #tpu.memory_space<vmem>>, vector<8x128xbf16>
    %c0_1 = arith.constant 0 : index
    %c0_2 = arith.constant 0 : index
    %1 = vector.load %arg2[%c0_1, %c0_2] : memref<128x128xbf16, #tpu.memory_space<vmem>>, vector<128x128xbf16>
    %cst = arith.constant dense<0.000000e+00> : vector<8x128xf32>
    %2 = tpu.matmul %0, %1, %cst {dimension_numbers = #tpu.dot_dimension_numbers<[1], [0], [0], [1], [0, 0, 1, 1], [], []>} : vector<8x128xbf16>, vector<128x128xbf16>, vector<8x128xf32> -> vector<8x128xf32>
    %c0_3 = arith.constant 0 : index
    %c0_4 = arith.constant 0 : index
    %3 = vector.load %arg3[%c0_3, %c0_4] : memref<1x128xf32, #tpu.memory_space<vmem>>, vector<1x128xf32>
    %4 = vector.broadcast %3 : vector<1x128xf32> to vector<8x128xf32>
    %5 = arith.addf %2, %4 : vector<8x128xf32>
    %cst_5 = arith.constant 0.000000e+00 : f32
    %6 = vector.broadcast %cst_5 : f32 to vector<8x128xf32>
    %7 = arith.maximumf %5, %6 : vector<8x128xf32>
    %8 = arith.truncf %7 : vector<8x128xf32> to vector<8x128xbf16>
    %c0_6 = arith.constant 0 : index
    %c0_7 = arith.constant 0 : index
    %9 = vector.load %arg4[%c0_6, %c0_7] : memref<128x128xbf16, #tpu.memory_space<vmem>>, vector<128x128xbf16>
    %cst_8 = arith.constant dense<0.000000e+00> : vector<8x128xf32>
    %10 = tpu.matmul %8, %9, %cst_8 {dimension_numbers = #tpu.dot_dimension_numbers<[1], [0], [0], [1], [0, 0, 1, 1], [], []>} : vector<8x128xbf16>, vector<128x128xbf16>, vector<8x128xf32> -> vector<8x128xf32>
    %c0_9 = arith.constant 0 : index
    %c0_10 = arith.constant 0 : index
    %11 = vector.load %arg5[%c0_9, %c0_10] : memref<1x128xf32, #tpu.memory_space<vmem>>, vector<1x128xf32>
    %12 = vector.broadcast %11 : vector<1x128xf32> to vector<8x128xf32>
    %13 = arith.addf %10, %12 : vector<8x128xf32>
    %cst_11 = arith.constant 0.000000e+00 : f32
    %14 = vector.broadcast %cst_11 : f32 to vector<8x128xf32>
    %15 = arith.maximumf %13, %14 : vector<8x128xf32>
    %16 = arith.truncf %15 : vector<8x128xf32> to vector<8x128xbf16>
    %c0_12 = arith.constant 0 : index
    %c0_13 = arith.constant 0 : index
    %17 = vector.load %arg6[%c0_12, %c0_13] : memref<128x128xbf16, #tpu.memory_space<vmem>>, vector<128x128xbf16>
    %cst_14 = arith.constant dense<0.000000e+00> : vector<8x128xf32>
    %18 = tpu.matmul %16, %17, %cst_14 {dimension_numbers = #tpu.dot_dimension_numbers<[1], [0], [0], [1], [0, 0, 1, 1], [], []>} : vector<8x128xbf16>, vector<128x128xbf16>, vector<8x128xf32> -> vector<8x128xf32>
    %c0_15 = arith.constant 0 : index
    %c0_16 = arith.constant 0 : index
    %19 = vector.load %arg7[%c0_15, %c0_16] : memref<1x128xf32, #tpu.memory_space<vmem>>, vector<1x128xf32>
    %20 = vector.broadcast %19 : vector<1x128xf32> to vector<8x128xf32>
    %21 = arith.addf %18, %20 : vector<8x128xf32>
    %c0_17 = arith.constant 0 : index
    %c0_18 = arith.constant 0 : index
    %22 = vector.load %arg8[%c0_17, %c0_18] : memref<8x128xf32, #tpu.memory_space<vmem>>, vector<8x128xf32>
    tpu.vector_store %arg8[%c0_17, %c0_18], %21 {strides = array<i32>} : memref<8x128xf32, #tpu.memory_space<vmem>>, vector<8x128xf32>,
    return
  }
  func.func @transform_0(%arg0: i32) -> (i32, i32) {
    %c0_i32 = arith.constant 0 : i32
    %c0_i32_0 = arith.constant 0 : i32
    return %arg0, %c0_i32 : i32, i32
  }
  func.func @transform_1(%arg0: i32) -> (i32, i32) {
    %c0_i32 = arith.constant 0 : i32
    %c0_i32_0 = arith.constant 0 : i32
    %c0_i32_1 = arith.constant 0 : i32
    return %c0_i32, %c0_i32_0 : i32, i32
  }
  func.func @transform_2(%arg0: i32) -> (i32, i32) {
    %c0_i32 = arith.constant 0 : i32
    %c0_i32_0 = arith.constant 0 : i32
    %c0_i32_1 = arith.constant 0 : i32
    return %c0_i32, %c0_i32_0 : i32, i32
  }
  func.func @transform_3(%arg0: i32) -> (i32, i32) {
    %c0_i32 = arith.constant 0 : i32
    %c0_i32_0 = arith.constant 0 : i32
    %c0_i32_1 = arith.constant 0 : i32
    return %c0_i32, %c0_i32_0 : i32, i32
  }
  func.func @transform_4(%arg0: i32) -> (i32, i32) {
    %c0_i32 = arith.constant 0 : i32
    %c0_i32_0 = arith.constant 0 : i32
    %c0_i32_1 = arith.constant 0 : i32
    return %c0_i32, %c0_i32_0 : i32, i32
  }
  func.func @transform_5(%arg0: i32) -> (i32, i32) {
    %c0_i32 = arith.constant 0 : i32
    %c0_i32_0 = arith.constant 0 : i32
    %c0_i32_1 = arith.constant 0 : i32
    return %c0_i32, %c0_i32_0 : i32, i32
  }
  func.func @transform_6(%arg0: i32) -> (i32, i32) {
    %c0_i32 = arith.constant 0 : i32
    %c0_i32_0 = arith.constant 0 : i32
    %c0_i32_1 = arith.constant 0 : i32
    return %c0_i32, %c0_i32_0 : i32, i32
  }
  func.func @transform_7(%arg0: i32) -> (i32, i32) {
    %c0_i32 = arith.constant 0 : i32
    %c0_i32_0 = arith.constant 0 : i32
    return %arg0, %c0_i32 : i32, i32
  }
}

module attributes {stable_mosaic.version = 11 : i64} {
  func.func @_fused_mlp_kernel(%arg0: i32, %arg1: memref<8x128xbf16, #tpu.memory_space<vmem>>, %arg2: memref<128x128xbf16, #tpu.memory_space<vmem>>, %arg3: memref<1x128xf32, #tpu.memory_space<vmem>>, %arg4: memref<128x128xbf16, #tpu.memory_space<vmem>>, %arg5: memref<1x128xf32, #tpu.memory_space<vmem>>, %arg6: memref<128x128xbf16, #tpu.memory_space<vmem>>, %arg7: memref<1x128xf32, #tpu.memory_space<vmem>>, %arg8: memref<8x128xf32, #tpu.memory_space<vmem>>) attributes {dimension_semantics = [#tpu.dimension_semantics<parallel>], iteration_bounds = array<i64: 1>, scalar_prefetch = 0 : i64, scratch_operands = 0 : i64, tpu.core_type = #tpu.core_type<tc>, window_params = [{transform_indices = @transform_0, window_bounds = array<i64: 8, 128>}, {pipeline_mode = #tpu.pipeline_mode<synchronous>, transform_indices = @transform_1, window_bounds = array<i64: 128, 128>}, {pipeline_mode = #tpu.pipeline_mode<synchronous>, transform_indices = @transform_2, window_bounds = array<i64: 1, 128>}, {pipeline_mode = #tpu.pipeline_mode<synchronous>, transform_indices = @transform_3, window_bounds = array<i64: 128, 128>}, {pipeline_mode = #tpu.pipeline_mode<synchronous>, transform_indices = @transform_4, window_bounds = array<i64: 1, 128>}, {pipeline_mode = #tpu.pipeline_mode<synchronous>, transform_indices = @transform_5, window_bounds = array<i64: 128, 128>}, {pipeline_mode = #tpu.pipeline_mode<synchronous>, transform_indices = @transform_6, window_bounds = array<i64: 1, 128>}, {transform_indices = @transform_7, window_bounds = array<i64: 8, 128>}]} {
    %c0 = arith.constant 0 : index
    %c0_0 = arith.constant 0 : index
    %0 = vector.load %arg1[%c0, %c0_0] : memref<8x128xbf16, #tpu.memory_space<vmem>>, vector<8x128xbf16>
    %c0_1 = arith.constant 0 : index
    %c0_2 = arith.constant 0 : index
    %1 = vector.load %arg2[%c0_1, %c0_2] : memref<128x128xbf16, #tpu.memory_space<vmem>>, vector<128x128xbf16>
    %cst = arith.constant dense<0.000000e+00> : vector<8x128xf32>
    %2 = tpu.matmul %0, %1, %cst {dimension_numbers = #tpu.dot_dimension_numbers<[1], [0], [0], [1], [0, 0, 1, 1], [], []>} : vector<8x128xbf16>, vector<128x128xbf16>, vector<8x128xf32> -> vector<8x128xf32>
    %c0_3 = arith.constant 0 : index
    %c0_4 = arith.constant 0 : index
    %3 = vector.load %arg3[%c0_3, %c0_4] : memref<1x128xf32, #tpu.memory_space<vmem>>, vector<1x128xf32>
    %4 = vector.broadcast %3 : vector<1x128xf32> to vector<8x128xf32>
    %5 = arith.addf %2, %4 : vector<8x128xf32>
    %cst_5 = arith.constant 0.000000e+00 : f32
    %6 = vector.broadcast %cst_5 : f32 to vector<8x128xf32>
    %7 = arith.maximumf %5, %6 : vector<8x128xf32>
    %8 = arith.truncf %7 : vector<8x128xf32> to vector<8x128xbf16>
    %c0_6 = arith.constant 0 : index
    %c0_7 = arith.constant 0 : index
    %9 = vector.load %arg4[%c0_6, %c0_7] : memref<128x128xbf16, #tpu.memory_space<vmem>>, vector<128x128xbf16>
    %cst_8 = arith.constant dense<0.000000e+00> : vector<8x128xf32>
    %10 = tpu.matmul %8, %9, %cst_8 {dimension_numbers = #tpu.dot_dimension_numbers<[1], [0], [0], [1], [0, 0, 1, 1], [], []>} : vector<8x128xbf16>, vector<128x128xbf16>, vector<8x128xf32> -> vector<8x128xf32>
    %c0_9 = arith.constant 0 : index
    %c0_10 = arith.constant 0 : index
    %11 = vector.load %arg5[%c0_9, %c0_10] : memref<1x128xf32, #tpu.memory_space<vmem>>, vector<1x128xf32>
    %12 = vector.broadcast %11 : vector<1x128xf32> to vector<8x128xf32>
    %13 = arith.addf %10, %12 : vector<8x128xf32>
    %cst_11 = arith.constant 0.000000e+00 : f32
    %14 = vector.broadcast %cst_11 : f32 to vector<8x128xf32>
    %15 = arith.maximumf %13, %14 : vector<8x128xf32>
    %16 = arith.truncf %15 : vector<8x128xf32> to vector<8x128xbf16>
    %c0_12 = arith.constant 0 : index
    %c0_13 = arith.constant 0 : index
    %17 = vector.load %arg6[%c0_12, %c0_13] : memref<128x128xbf16, #tpu.memory_space<vmem>>, vector<128x128xbf16>
    %cst_14 = arith.constant dense<0.000000e+00> : vector<8x128xf32>
    %18 = tpu.matmul %16, %17, %cst_14 {dimension_numbers = #tpu.dot_dimension_numbers<[1], [0], [0], [1], [0, 0, 1, 1], [], []>} : vector<8x128xbf16>, vector<128x128xbf16>, vector<8x128xf32> -> vector<8x128xf32>
    %c0_15 = arith.constant 0 : index
    %c0_16 = arith.constant 0 : index
    %19 = vector.load %arg7[%c0_15, %c0_16] : memref<1x128xf32, #tpu.memory_space<vmem>>, vector<1x128xf32>
    %20 = vector.broadcast %19 : vector<1x128xf32> to vector<8x128xf32>
    %21 = arith.addf %18, %20 : vector<8x128xf32>
    %c0_17 = arith.constant 0 : index
    %c0_18 = arith.constant 0 : index
    %22 = vector.load %arg8[%c0_17, %c0_18] : memref<8x128xf32, #tpu.memory_space<vmem>>, vector<8x128xf32>
    tpu.vector_store %arg8[%c0_17, %c0_18], %21 {strides = array<i32>} : memref<8x128xf32, #tpu.memory_space<vmem>>, vector<8x128xf32>,
    return
  }
  func.func @transform_0(%arg0: i32) -> (i32, i32) {
    %c0_i32 = arith.constant 0 : i32
    %c0_i32_0 = arith.constant 0 : i32
    return %arg0, %c0_i32 : i32, i32
  }
  func.func @transform_1(%arg0: i32) -> (i32, i32) {
    %c0_i32 = arith.constant 0 : i32
    %c0_i32_0 = arith.constant 0 : i32
    %c0_i32_1 = arith.constant 0 : i32
    return %c0_i32, %c0_i32_0 : i32, i32
  }
  func.func @transform_2(%arg0: i32) -> (i32, i32) {
    %c0_i32 = arith.constant 0 : i32
    %c0_i32_0 = arith.constant 0 : i32
    %c0_i32_1 = arith.constant 0 : i32
    return %c0_i32, %c0_i32_0 : i32, i32
  }
  func.func @transform_3(%arg0: i32) -> (i32, i32) {
    %c0_i32 = arith.constant 0 : i32
    %c0_i32_0 = arith.constant 0 : i32
    %c0_i32_1 = arith.constant 0 : i32
    return %c0_i32, %c0_i32_0 : i32, i32
  }
  func.func @transform_4(%arg0: i32) -> (i32, i32) {
    %c0_i32 = arith.constant 0 : i32
    %c0_i32_0 = arith.constant 0 : i32
    %c0_i32_1 = arith.constant 0 : i32
    return %c0_i32, %c0_i32_0 : i32, i32
  }
  func.func @transform_5(%arg0: i32) -> (i32, i32) {
    %c0_i32 = arith.constant 0 : i32
    %c0_i32_0 = arith.constant 0 : i32
    %c0_i32_1 = arith.constant 0 : i32
    return %c0_i32, %c0_i32_0 : i32, i32
  }
  func.func @transform_6(%arg0: i32) -> (i32, i32) {
    %c0_i32 = arith.constant 0 : i32
    %c0_i32_0 = arith.constant 0 : i32
    %c0_i32_1 = arith.constant 0 : i32
    return %c0_i32, %c0_i32_0 : i32, i32
  }
  func.func @transform_7(%arg0: i32) -> (i32, i32) {
    %c0_i32 = arith.constant 0 : i32
    %c0_i32_0 = arith.constant 0 : i32
    return %arg0, %c0_i32 : i32, i32
  }
}

</mosaic_0001>

<llo_original>
// kernel: tpu_custom_call.1
$region0: #{tpu_custom_call.1}
  #allocation0 [shape = 'u32[]', space=smem, size = 0x4, offset = 0x4, fixed_abs, tag = 'smem constant byte address 0x4 - core index']
  #allocation1 [shape = 'u32[72,128]{1,0:T(1,128)}', space=vmem, size = 0x9000, scoped, tag = 'internal scratch']
  %s0 = inlined_call_operand.hbm [shape: bf16[8,128], index: 0, kind: input, shape index: {}]
  %s1 = inlined_call_operand.hbm [shape: bf16[128,128], index: 1, kind: input, shape index: {}]
  %s2 = inlined_call_operand.vmem [shape: f32[1,128], index: 2, kind: input, shape index: {}]
  %s3 = inlined_call_operand.hbm [shape: bf16[128,128], index: 3, kind: input, shape index: {}]
  %s4 = inlined_call_operand.vmem [shape: f32[1,128], index: 4, kind: input, shape index: {}]
  %s5 = inlined_call_operand.hbm [shape: bf16[128,128], index: 5, kind: input, shape index: {}]
  %s6 = inlined_call_operand.vmem [shape: f32[1,128], index: 6, kind: input, shape index: {}]
  %s7 = inlined_call_operand.hbm [shape: f32[8,128], index: 7, kind: output, shape index: {}]
  %s8 = sld [smem:[#allocation0]]
  $region54: #{tpu_custom_call.1} parent=0
    _
  %s10 = ssub.s32 1, %s8
  %s11 = scalar_select 0, %s10, %s8
  $region1: #{tpu_custom_call.1} parent=0
    #allocation2 [shape = 'u8[2048]{0}', space=vmem, size = 0x800, scoped, tag = 'input window, operand 0, single buffered']
    #allocation3 [shape = 's32[1]{0}', space=sflag, size = 0x4, scoped, tag = 'scoped memory for tpu_custom_call.1']
    #allocation4 [shape = 's32[1]{0}', space=sflag, size = 0x4, scoped, tag = 'scoped memory for tpu_custom_call.1']
    #allocation5 [shape = 'u8[32768]{0}', space=vmem, size = 0x8000, scoped, tag = 'input window, operand 1, single buffered']
    #allocation6 [shape = 's32[1]{0}', space=sflag, size = 0x4, scoped, tag = 'scoped memory for tpu_custom_call.1']
    #allocation7 [shape = 'u8[32768]{0}', space=vmem, size = 0x8000, scoped, tag = 'input window, operand 3, single buffered']
    #allocation8 [shape = 'u8[32768]{0}', space=vmem, size = 0x8000, scoped, tag = 'input window, operand 5, single buffered']
    #allocation9 [shape = 's32[1]{0}', space=sflag, size = 0x4, scoped, tag = 'scoped memory for tpu_custom_call.1']
    #allocation10 [shape = 'u8[4096]{0}', space=vmem, size = 0x1000, scoped, tag = 'output window, operand 0, single buffered']
    %12 = vsyncpa [#allocation3], 0
    %13 = vsyncpa [#allocation6], 0
    %14 = vsyncpa [#allocation9], 0
    %15 = vsyncpa [#allocation4], 0
    // Predicated region
    $region2: #{tpu_custom_call.1} parent=1 // pred_check
      _
    $region3: #{tpu_custom_call.1} parent=1 // pred_check_branch
      %17 = sbr.rel (0) target = $region5
    $region4: #{tpu_custom_call.1} parent=1 // pred_region
      %19 = vsyncadd [#allocation3], 0
      %s21 = sshll.u32 %s0, 4
      %s22 = int_to_ptr.hbm [resolvable:$true] %s21
      %s23 = sshll.u32 [#allocation2], 4
      %s24 = int_to_ptr.vmem [resolvable:$true] %s23
      %26 = dma.hbm_to_vmem [thread:$0]  %s22, 64, %s24, [#allocation3]
    $region5: #{tpu_custom_call.1} parent=1 // pred_fallthru
      _
    // Predicated region
    $region6: #{tpu_custom_call.1} parent=1 // pred_check
      _
    $region7: #{tpu_custom_call.1} parent=1 // pred_check_branch
      %28 = sbr.rel (0) target = $region9
    $region8: #{tpu_custom_call.1} parent=1 // pred_region
      %30 = vsyncadd [#allocation6], 0
      %s31 = sshll.u32 %s1, 4
      %s32 = int_to_ptr.hbm [resolvable:$true] %s31
      %s33 = sshll.u32 [#allocation5], 4
      %s34 = int_to_ptr.vmem [resolvable:$true] %s33
      %39 = dma.hbm_to_vmem [thread:$0]  %s32, 1024, %s34, [#allocation6], 64, 64, 4
    $region9: #{tpu_custom_call.1} parent=1 // pred_fallthru
      _
    // Predicated region
    $region10: #{tpu_custom_call.1} parent=1 // pred_check
      _
    $region11: #{tpu_custom_call.1} parent=1 // pred_check_branch
      %41 = sbr.rel (0) target = $region13
    $region12: #{tpu_custom_call.1} parent=1 // pred_region
      _
    $region13: #{tpu_custom_call.1} parent=1 // pred_fallthru
      _
    // Predicated region
    $region14: #{tpu_custom_call.1} parent=1 // pred_check
      _
    $region15: #{tpu_custom_call.1} parent=1 // pred_check_branch
      %43 = sbr.rel (0) target = $region17
    $region16: #{tpu_custom_call.1} parent=1 // pred_region
      %45 = vsyncadd [#allocation6], 0
      %s46 = sshll.u32 %s3, 4
      %s47 = int_to_ptr.hbm [resolvable:$true] %s46
      %s48 = sshll.u32 [#allocation7], 4
      %s49 = int_to_ptr.vmem [resolvable:$true] %s48
      %54 = dma.hbm_to_vmem [thread:$0]  %s47, 1024, %s49, [#allocation6], 64, 64, 4
    $region17: #{tpu_custom_call.1} parent=1 // pred_fallthru
      _
    // Predicated region
    $region18: #{tpu_custom_call.1} parent=1 // pred_check
      _
    $region19: #{tpu_custom_call.1} parent=1 // pred_check_branch
      %56 = sbr.rel (0) target = $region21
    $region20: #{tpu_custom_call.1} parent=1 // pred_region
      _
    $region21: #{tpu_custom_call.1} parent=1 // pred_fallthru
      _
    // Predicated region
    $region22: #{tpu_custom_call.1} parent=1 // pred_check
      _
    $region23: #{tpu_custom_call.1} parent=1 // pred_check_branch
      %58 = sbr.rel (0) target = $region25
    $region24: #{tpu_custom_call.1} parent=1 // pred_region
      %60 = vsyncadd [#allocation9], 0
      %s61 = sshll.u32 %s5, 4
      %s62 = int_to_ptr.hbm [resolvable:$true] %s61
      %s63 = sshll.u32 [#allocation8], 4
      %s64 = int_to_ptr.vmem [resolvable:$true] %s63
      %69 = dma.hbm_to_vmem [thread:$0]  %s62, 1024, %s64, [#allocation9], 64, 64, 4
    $region25: #{tpu_custom_call.1} parent=1 // pred_fallthru
      _
    // Predicated region
    $region26: #{tpu_custom_call.1} parent=1 // pred_check
      _
    $region27: #{tpu_custom_call.1} parent=1 // pred_check_branch
      %71 = sbr.rel (0) target = $region29
    $region28: #{tpu_custom_call.1} parent=1 // pred_region
      _
    $region29: #{tpu_custom_call.1} parent=1 // pred_fallthru
      _
    // Predicated region
    $region30: #{tpu_custom_call.1} parent=1 // pred_check
      _
    $region31: #{tpu_custom_call.1} parent=1 // pred_check_branch
      %73 = sbr.rel (0) target = $region33
    $region32: #{tpu_custom_call.1} parent=1 // pred_region
      %75 = dma.done [#allocation3], 64
    $region33: #{tpu_custom_call.1} parent=1 // pred_fallthru
      _
    // Predicated region
    $region34: #{tpu_custom_call.1} parent=1 // pred_check
      _
    $region35: #{tpu_custom_call.1} parent=1 // pred_check_branch
      %77 = sbr.rel (0) target = $region37
    $region36: #{tpu_custom_call.1} parent=1 // pred_region
      %79 = dma.done [#allocation6], 1024
    $region37: #{tpu_custom_call.1} parent=1 // pred_fallthru
      _
    // Predicated region
    $region38: #{tpu_custom_call.1} parent=1 // pred_check
      _
    $region39: #{tpu_custom_call.1} parent=1 // pred_check_branch
      %81 = sbr.rel (0) target = $region41
    $region40: #{tpu_custom_call.1} parent=1 // pred_region
      %83 = dma.done [#allocation6], 1024
    $region41: #{tpu_custom_call.1} parent=1 // pred_fallthru
      _
    // Predicated region
    $region42: #{tpu_custom_call.1} parent=1 // pred_check
      _
    $region43: #{tpu_custom_call.1} parent=1 // pred_check_branch
      %85 = sbr.rel (0) target = $region45
    $region44: #{tpu_custom_call.1} parent=1 // pred_region
      %87 = dma.done [#allocation9], 1024
    $region45: #{tpu_custom_call.1} parent=1 // pred_fallthru
      _
    %v88 = vld [vmem:[#allocation2] sm:$0xf]
    %v89 = vld [vmem:[#allocation5] sm:$0xf]
    %v90 = vld [vmem:[#allocation5 + $0x4] sm:$0xf]
    %v91 = vld [vmem:[#allocation5 + $0x8] sm:$0xf]
    %v92 = vld [vmem:[#allocation5 + $0xc] sm:$0xf]
    %v93 = vld [vmem:[#allocation5 + $0x10] sm:$0xf]
    %v94 = vld [vmem:[#allocation5 + $0x14] sm:$0xf]
    %v95 = vld [vmem:[#allocation5 + $0x18] sm:$0xf]
    %v96 = vld [vmem:[#allocation5 + $0x1c] sm:$0xf]
    %v97 = vld [vmem:[#allocation5 + $0x20] sm:$0xf]
    %v98 = vld [vmem:[#allocation5 + $0x24] sm:$0xf]
    %v99 = vld [vmem:[#allocation5 + $0x28] sm:$0xf]
    %v100 = vld [vmem:[#allocation5 + $0x2c] sm:$0xf]
    %v101 = vld [vmem:[#allocation5 + $0x30] sm:$0xf]
    %v102 = vld [vmem:[#allocation5 + $0x34] sm:$0xf]
    %v103 = vld [vmem:[#allocation5 + $0x38] sm:$0xf]
    %v104 = vld [vmem:[#allocation5 + $0x3c] sm:$0xf]
    %v105 = vld [vmem:[%s2] sm:$0x1]
    %v107 = vperm.slane %v105, 0
    %v125 = vunpack.c.l.b16 %v89
    %v126 = vunpack.c.l.b16 %v90
    %v127 = vunpack.c.l.b16 %v91
    %v128 = vunpack.c.l.b16 %v92
    %v129 = vunpack.c.l.b16 %v93
    %v130 = vunpack.c.l.b16 %v94
    %v131 = vunpack.c.l.b16 %v95
    %v132 = vunpack.c.l.b16 %v96
    %v133 = vunpack.c.l.b16 %v97
    %v134 = vunpack.c.l.b16 %v98
    %v135 = vunpack.c.l.b16 %v99
    %v136 = vunpack.c.l.b16 %v100
    %v137 = vunpack.c.l.b16 %v101
    %v138 = vunpack.c.l.b16 %v102
    %v139 = vunpack.c.l.b16 %v103
    %v140 = vunpack.c.l.b16 %v104
    %v141 = vpack.c.b16 %v126, %v125
    %v142 = vpack.c.b16 %v128, %v127
    %v143 = vpack.c.b16 %v130, %v129
    %v144 = vpack.c.b16 %v132, %v131
    %v145 = vpack.c.b16 %v134, %v133
    %v146 = vpack.c.b16 %v136, %v135
    %v147 = vpack.c.b16 %v138, %v137
    %v148 = vpack.c.b16 %v140, %v139
    %157 = vmatpush.bf16.msra.mxu0 %v148
    %158 = vmatpush.bf16.msra.mxu0 %v147
    %159 = vmatpush.bf16.msra.mxu0 %v146
    %160 = vmatpush.bf16.msra.mxu0 %v145
    %161 = vmatpush.bf16.msra.mxu0 %v144
    %162 = vmatpush.bf16.msra.mxu0 %v143
    %163 = vmatpush.bf16.msra.mxu0 %v142
    %164 = vmatpush.bf16.msra.mxu0 %v141
    %165 = vmatmul.bf16.gmra.mxu0 %v88
    %v166 = vpop.f32.mrf.mxu0
    %v167 = vadd.f32 %v107, %v166
    %v168 = vpop.f32.mrf.mxu0
    %169 = vdwg.mxu0
    %v170 = vmax.f32 %v167, 0.0
    %v171 = vpack.c.bf16 %v170, %v170
    %v172 = vld [vmem:[#allocation7] sm:$0xf]
    %v173 = vld [vmem:[#allocation7 + $0x4] sm:$0xf]
    %v174 = vld [vmem:[#allocation7 + $0x8] sm:$0xf]
    %v175 = vld [vmem:[#allocation7 + $0xc] sm:$0xf]
    %v176 = vld [vmem:[#allocation7 + $0x10] sm:$0xf]
    %v177 = vld [vmem:[#allocation7 + $0x14] sm:$0xf]
    %v178 = vld [vmem:[#allocation7 + $0x18] sm:$0xf]
    %v179 = vld [vmem:[#allocation7 + $0x1c] sm:$0xf]
    %v180 = vld [vmem:[#allocation7 + $0x20] sm:$0xf]
    %v181 = vld [vmem:[#allocation7 + $0x24] sm:$0xf]
    %v182 = vld [vmem:[#allocation7 + $0x28] sm:$0xf]
    %v183 = vld [vmem:[#allocation7 + $0x2c] sm:$0xf]
    %v184 = vld [vmem:[#allocation7 + $0x30] sm:$0xf]
    %v185 = vld [vmem:[#allocation7 + $0x34] sm:$0xf]
    %v186 = vld [vmem:[#allocation7 + $0x38] sm:$0xf]
    %v187 = vld [vmem:[#allocation7 + $0x3c] sm:$0xf]
    %v188 = vld [vmem:[%s4] sm:$0x1]
    %v190 = vperm.slane %v188, 0
    %v208 = vunpack.c.l.b16 %v172
    %v209 = vunpack.c.l.b16 %v173
    %v210 = vunpack.c.l.b16 %v174
    %v211 = vunpack.c.l.b16 %v175
    %v212 = vunpack.c.l.b16 %v176
    %v213 = vunpack.c.l.b16 %v177
    %v214 = vunpack.c.l.b16 %v178
    %v215 = vunpack.c.l.b16 %v179
    %v216 = vunpack.c.l.b16 %v180
    %v217 = vunpack.c.l.b16 %v181
    %v218 = vunpack.c.l.b16 %v182
    %v219 = vunpack.c.l.b16 %v183
    %v220 = vunpack.c.l.b16 %v184
    %v221 = vunpack.c.l.b16 %v185
    %v222 = vunpack.c.l.b16 %v186
    %v223 = vunpack.c.l.b16 %v187
    %v224 = vpack.c.b16 %v209, %v208
    %v225 = vpack.c.b16 %v211, %v210
    %v226 = vpack.c.b16 %v213, %v212
    %v227 = vpack.c.b16 %v215, %v214
    %v228 = vpack.c.b16 %v217, %v216
    %v229 = vpack.c.b16 %v219, %v218
    %v230 = vpack.c.b16 %v221, %v220
    %v231 = vpack.c.b16 %v223, %v222
    %240 = vmatpush.bf16.msra.mxu0 %v231
    %241 = vmatpush.bf16.msra.mxu0 %v230
    %242 = vmatpush.bf16.msra.mxu0 %v229
    %243 = vmatpush.bf16.msra.mxu0 %v228
    %244 = vmatpush.bf16.msra.mxu0 %v227
    %245 = vmatpush.bf16.msra.mxu0 %v226
    %246 = vmatpush.bf16.msra.mxu0 %v225
    %247 = vmatpush.bf16.msra.mxu0 %v224
    %248 = vmatmul.bf16.gmra.mxu0 %v171
    %v249 = vpop.f32.mrf.mxu0
    %v250 = vadd.f32 %v190, %v249
    %v251 = vpop.f32.mrf.mxu0
    %252 = vdwg.mxu0
    %v253 = vmax.f32 %v250, 0.0
    %v254 = vpack.c.bf16 %v253, %v253
    %v255 = vld [vmem:[#allocation8] sm:$0xf]
    %v256 = vld [vmem:[#allocation8 + $0x4] sm:$0xf]
    %v257 = vld [vmem:[#allocation8 + $0x8] sm:$0xf]
    %v258 = vld [vmem:[#allocation8 + $0xc] sm:$0xf]
    %v259 = vld [vmem:[#allocation8 + $0x10] sm:$0xf]
    %v260 = vld [vmem:[#allocation8 + $0x14] sm:$0xf]
    %v261 = vld [vmem:[#allocation8 + $0x18] sm:$0xf]
    %v262 = vld [vmem:[#allocation8 + $0x1c] sm:$0xf]
    %v263 = vld [vmem:[#allocation8 + $0x20] sm:$0xf]
    %v264 = vld [vmem:[#allocation8 + $0x24] sm:$0xf]
    %v265 = vld [vmem:[#allocation8 + $0x28] sm:$0xf]
    %v266 = vld [vmem:[#allocation8 + $0x2c] sm:$0xf]
    %v267 = vld [vmem:[#allocation8 + $0x30] sm:$0xf]
    %v268 = vld [vmem:[#allocation8 + $0x34] sm:$0xf]
    %v269 = vld [vmem:[#allocation8 + $0x38] sm:$0xf]
    %v270 = vld [vmem:[#allocation8 + $0x3c] sm:$0xf]
    %v271 = vld [vmem:[%s6] sm:$0x1]
    %v273 = vperm.slane %v271, 0
    %v291 = vunpack.c.l.b16 %v255
    %v292 = vunpack.c.l.b16 %v256
    %v293 = vunpack.c.l.b16 %v257
    %v294 = vunpack.c.l.b16 %v258
    %v295 = vunpack.c.l.b16 %v259
    %v296 = vunpack.c.l.b16 %v260
    %v297 = vunpack.c.l.b16 %v261
    %v298 = vunpack.c.l.b16 %v262
    %v299 = vunpack.c.l.b16 %v263
    %v300 = vunpack.c.l.b16 %v264
    %v301 = vunpack.c.l.b16 %v265
    %v302 = vunpack.c.l.b16 %v266
    %v303 = vunpack.c.l.b16 %v267
    %v304 = vunpack.c.l.b16 %v268
    %v305 = vunpack.c.l.b16 %v269
    %v306 = vunpack.c.l.b16 %v270
    %v307 = vpack.c.b16 %v292, %v291
    %v308 = vpack.c.b16 %v294, %v293
    %v309 = vpack.c.b16 %v296, %v295
    %v310 = vpack.c.b16 %v298, %v297
    %v311 = vpack.c.b16 %v300, %v299
    %v312 = vpack.c.b16 %v302, %v301
    %v313 = vpack.c.b16 %v304, %v303
    %v314 = vpack.c.b16 %v306, %v305
    %323 = vmatpush.bf16.msra.mxu0 %v314
    %324 = vmatpush.bf16.msra.mxu0 %v313
    %325 = vmatpush.bf16.msra.mxu0 %v312
    %326 = vmatpush.bf16.msra.mxu0 %v311
    %327 = vmatpush.bf16.msra.mxu0 %v310
    %328 = vmatpush.bf16.msra.mxu0 %v309
    %329 = vmatpush.bf16.msra.mxu0 %v308
    %330 = vmatpush.bf16.msra.mxu0 %v307
    %331 = vmatmul.bf16.gmra.mxu0 %v254
    %v332 = vpop.f32.mrf.mxu0
    %v333 = vadd.f32 %v273, %v332
    %v334 = vpop.f32.mrf.mxu0
    %335 = vdwg.mxu0
    %336 = vst [vmem:[#allocation10] sm:$0xff] %v333
    // Predicated region
    $region46: #{tpu_custom_call.1} parent=1 // pred_check
      _
    $region47: #{tpu_custom_call.1} parent=1 // pred_check_branch
      %338 = sbr.rel (0) target = $region49
    $region48: #{tpu_custom_call.1} parent=1 // pred_region
      %340 = vsyncadd [#allocation4], 0
      %s342 = sshll.u32 [#allocation10], 4
      %s343 = int_to_ptr.vmem [resolvable:$true] %s342
      %s344 = sshll.u32 %s7, 4
      %s345 = int_to_ptr.hbm [resolvable:$true] %s344
      %347 = dma.vmem_to_hbm [thread:$0]  %s343, 128, %s345, [#allocation4]
    $region49: #{tpu_custom_call.1} parent=1 // pred_fallthru
      _
    // Predicated region
    $region50: #{tpu_custom_call.1} parent=1 // pred_check
      _
    $region51: #{tpu_custom_call.1} parent=1 // pred_check_branch
      %349 = sbr.rel (0) target = $region53
    $region52: #{tpu_custom_call.1} parent=1 // pred_region
      %351 = dma.done [#allocation4], 128
    $region53: #{tpu_custom_call.1} parent=1 // pred_fallthru
      _
    %352 = vsyncpa [#allocation3], 1
    %353 = vsyncpa [#allocation6], 1
    %354 = vsyncpa [#allocation9], 1
    %355 = vsyncpa [#allocation4], 1

// kernel: tpu_custom_call.1
$region0: #{tpu_custom_call.1}
  #allocation0 [shape = 'u32[]', space=smem, size = 0x4, offset = 0x4, fixed_abs, tag = 'smem constant byte address 0x4 - core index']
  #allocation1 [shape = 'u32[72,128]{1,0:T(1,128)}', space=vmem, size = 0x9000, scoped, tag = 'internal scratch']
  %s0 = inlined_call_operand.hbm [shape: bf16[8,128], index: 0, kind: input, shape index: {}]
  %s1 = inlined_call_operand.hbm [shape: bf16[128,128], index: 1, kind: input, shape index: {}]
  %s2 = inlined_call_operand.vmem [shape: f32[1,128], index: 2, kind: input, shape index: {}]
  %s3 = inlined_call_operand.hbm [shape: bf16[128,128], index: 3, kind: input, shape index: {}]
  %s4 = inlined_call_operand.vmem [shape: f32[1,128], index: 4, kind: input, shape index: {}]
  %s5 = inlined_call_operand.hbm [shape: bf16[128,128], index: 5, kind: input, shape index: {}]
  %s6 = inlined_call_operand.vmem [shape: f32[1,128], index: 6, kind: input, shape index: {}]
  %s7 = inlined_call_operand.hbm [shape: f32[8,128], index: 7, kind: output, shape index: {}]
  %s8 = sld [smem:[#allocation0]]
  $region54: #{tpu_custom_call.1} parent=0
    _
  %s10 = ssub.s32 1, %s8
  %s11 = scalar_select 0, %s10, %s8
  $region1: #{tpu_custom_call.1} parent=0
    #allocation2 [shape = 'u8[2048]{0}', space=vmem, size = 0x800, scoped, tag = 'input window, operand 0, single buffered']
    #allocation3 [shape = 's32[1]{0}', space=sflag, size = 0x4, scoped, tag = 'scoped memory for tpu_custom_call.1']
    #allocation4 [shape = 's32[1]{0}', space=sflag, size = 0x4, scoped, tag = 'scoped memory for tpu_custom_call.1']
    #allocation5 [shape = 'u8[32768]{0}', space=vmem, size = 0x8000, scoped, tag = 'input window, operand 1, single buffered']
    #allocation6 [shape = 's32[1]{0}', space=sflag, size = 0x4, scoped, tag = 'scoped memory for tpu_custom_call.1']
    #allocation7 [shape = 'u8[32768]{0}', space=vmem, size = 0x8000, scoped, tag = 'input window, operand 3, single buffered']
    #allocation8 [shape = 'u8[32768]{0}', space=vmem, size = 0x8000, scoped, tag = 'input window, operand 5, single buffered']
    #allocation9 [shape = 's32[1]{0}', space=sflag, size = 0x4, scoped, tag = 'scoped memory for tpu_custom_call.1']
    #allocation10 [shape = 'u8[4096]{0}', space=vmem, size = 0x1000, scoped, tag = 'output window, operand 0, single buffered']
    %12 = vsyncpa [#allocation3], 0
    %13 = vsyncpa [#allocation6], 0
    %14 = vsyncpa [#allocation9], 0
    %15 = vsyncpa [#allocation4], 0
    // Predicated region
    $region2: #{tpu_custom_call.1} parent=1 // pred_check
      _
    $region3: #{tpu_custom_call.1} parent=1 // pred_check_branch
      %17 = sbr.rel (0) target = $region5
    $region4: #{tpu_custom_call.1} parent=1 // pred_region
      %19 = vsyncadd [#allocation3], 0
      %s21 = sshll.u32 %s0, 4
      %s22 = int_to_ptr.hbm [resolvable:$true] %s21
      %s23 = sshll.u32 [#allocation2], 4
      %s24 = int_to_ptr.vmem [resolvable:$true] %s23
      %26 = dma.hbm_to_vmem [thread:$0]  %s22, 64, %s24, [#allocation3]
    $region5: #{tpu_custom_call.1} parent=1 // pred_fallthru
      _
    // Predicated region
    $region6: #{tpu_custom_call.1} parent=1 // pred_check
      _
    $region7: #{tpu_custom_call.1} parent=1 // pred_check_branch
      %28 = sbr.rel (0) target = $region9
    $region8: #{tpu_custom_call.1} parent=1 // pred_region
      %30 = vsyncadd [#allocation6], 0
      %s31 = sshll.u32 %s1, 4
      %s32 = int_to_ptr.hbm [resolvable:$true] %s31
      %s33 = sshll.u32 [#allocation5], 4
      %s34 = int_to_ptr.vmem [resolvable:$true] %s33
      %39 = dma.hbm_to_vmem [thread:$0]  %s32, 1024, %s34, [#allocation6], 64, 64, 4
    $region9: #{tpu_custom_call.1} parent=1 // pred_fallthru
      _
    // Predicated region
    $region10: #{tpu_custom_call.1} parent=1 // pred_check
      _
    $region11: #{tpu_custom_call.1} parent=1 // pred_check_branch
      %41 = sbr.rel (0) target = $region13
    $region12: #{tpu_custom_call.1} parent=1 // pred_region
      _
    $region13: #{tpu_custom_call.1} parent=1 // pred_fallthru
      _
    // Predicated region
    $region14: #{tpu_custom_call.1} parent=1 // pred_check
      _
    $region15: #{tpu_custom_call.1} parent=1 // pred_check_branch
      %43 = sbr.rel (0) target = $region17
    $region16: #{tpu_custom_call.1} parent=1 // pred_region
      %45 = vsyncadd [#allocation6], 0
      %s46 = sshll.u32 %s3, 4
      %s47 = int_to_ptr.hbm [resolvable:$true] %s46
      %s48 = sshll.u32 [#allocation7], 4
      %s49 = int_to_ptr.vmem [resolvable:$true] %s48
      %54 = dma.hbm_to_vmem [thread:$0]  %s47, 1024, %s49, [#allocation6], 64, 64, 4
    $region17: #{tpu_custom_call.1} parent=1 // pred_fallthru
      _
    // Predicated region
    $region18: #{tpu_custom_call.1} parent=1 // pred_check
      _
    $region19: #{tpu_custom_call.1} parent=1 // pred_check_branch
      %56 = sbr.rel (0) target = $region21
    $region20: #{tpu_custom_call.1} parent=1 // pred_region
      _
    $region21: #{tpu_custom_call.1} parent=1 // pred_fallthru
      _
    // Predicated region
    $region22: #{tpu_custom_call.1} parent=1 // pred_check
      _
    $region23: #{tpu_custom_call.1} parent=1 // pred_check_branch
      %58 = sbr.rel (0) target = $region25
    $region24: #{tpu_custom_call.1} parent=1 // pred_region
      %60 = vsyncadd [#allocation9], 0
      %s61 = sshll.u32 %s5, 4
      %s62 = int_to_ptr.hbm [resolvable:$true] %s61
      %s63 = sshll.u32 [#allocation8], 4
      %s64 = int_to_ptr.vmem [resolvable:$true] %s63
      %69 = dma.hbm_to_vmem [thread:$0]  %s62, 1024, %s64, [#allocation9], 64, 64, 4
    $region25: #{tpu_custom_call.1} parent=1 // pred_fallthru
      _
    // Predicated region
    $region26: #{tpu_custom_call.1} parent=1 // pred_check
      _
    $region27: #{tpu_custom_call.1} parent=1 // pred_check_branch
      %71 = sbr.rel (0) target = $region29
    $region28: #{tpu_custom_call.1} parent=1 // pred_region
      _
    $region29: #{tpu_custom_call.1} parent=1 // pred_fallthru
      _
    // Predicated region
    $region30: #{tpu_custom_call.1} parent=1 // pred_check
      _
    $region31: #{tpu_custom_call.1} parent=1 // pred_check_branch
      %73 = sbr.rel (0) target = $region33
    $region32: #{tpu_custom_call.1} parent=1 // pred_region
      %75 = dma.done [#allocation3], 64
    $region33: #{tpu_custom_call.1} parent=1 // pred_fallthru
      _
    // Predicated region
    $region34: #{tpu_custom_call.1} parent=1 // pred_check
      _
    $region35: #{tpu_custom_call.1} parent=1 // pred_check_branch
      %77 = sbr.rel (0) target = $region37
    $region36: #{tpu_custom_call.1} parent=1 // pred_region
      %79 = dma.done [#allocation6], 1024
    $region37: #{tpu_custom_call.1} parent=1 // pred_fallthru
      _
    // Predicated region
    $region38: #{tpu_custom_call.1} parent=1 // pred_check
      _
    $region39: #{tpu_custom_call.1} parent=1 // pred_check_branch
      %81 = sbr.rel (0) target = $region41
    $region40: #{tpu_custom_call.1} parent=1 // pred_region
      %83 = dma.done [#allocation6], 1024
    $region41: #{tpu_custom_call.1} parent=1 // pred_fallthru
      _
    // Predicated region
    $region42: #{tpu_custom_call.1} parent=1 // pred_check
      _
    $region43: #{tpu_custom_call.1} parent=1 // pred_check_branch
      %85 = sbr.rel (0) target = $region45
    $region44: #{tpu_custom_call.1} parent=1 // pred_region
      %87 = dma.done [#allocation9], 1024
    $region45: #{tpu_custom_call.1} parent=1 // pred_fallthru
      _
    %v88 = vld [vmem:[#allocation2] sm:$0xf]
    %v89 = vld [vmem:[#allocation5] sm:$0xf]
    %v90 = vld [vmem:[#allocation5 + $0x4] sm:$0xf]
    %v91 = vld [vmem:[#allocation5 + $0x8] sm:$0xf]
    %v92 = vld [vmem:[#allocation5 + $0xc] sm:$0xf]
    %v93 = vld [vmem:[#allocation5 + $0x10] sm:$0xf]
    %v94 = vld [vmem:[#allocation5 + $0x14] sm:$0xf]
    %v95 = vld [vmem:[#allocation5 + $0x18] sm:$0xf]
    %v96 = vld [vmem:[#allocation5 + $0x1c] sm:$0xf]
    %v97 = vld [vmem:[#allocation5 + $0x20] sm:$0xf]
    %v98 = vld [vmem:[#allocation5 + $0x24] sm:$0xf]
    %v99 = vld [vmem:[#allocation5 + $0x28] sm:$0xf]
    %v100 = vld [vmem:[#allocation5 + $0x2c] sm:$0xf]
    %v101 = vld [vmem:[#allocation5 + $0x30] sm:$0xf]
    %v102 = vld [vmem:[#allocation5 + $0x34] sm:$0xf]
    %v103 = vld [vmem:[#allocation5 + $0x38] sm:$0xf]
    %v104 = vld [vmem:[#allocation5 + $0x3c] sm:$0xf]
    %v105 = vld [vmem:[%s2] sm:$0x1]
    %v107 = vperm.slane %v105, 0
    %v125 = vunpack.c.l.b16 %v89
    %v126 = vunpack.c.l.b16 %v90
    %v127 = vunpack.c.l.b16 %v91
    %v128 = vunpack.c.l.b16 %v92
    %v129 = vunpack.c.l.b16 %v93
    %v130 = vunpack.c.l.b16 %v94
    %v131 = vunpack.c.l.b16 %v95
    %v132 = vunpack.c.l.b16 %v96
    %v133 = vunpack.c.l.b16 %v97
    %v134 = vunpack.c.l.b16 %v98
    %v135 = vunpack.c.l.b16 %v99
    %v136 = vunpack.c.l.b16 %v100
    %v137 = vunpack.c.l.b16 %v101
    %v138 = vunpack.c.l.b16 %v102
    %v139 = vunpack.c.l.b16 %v103
    %v140 = vunpack.c.l.b16 %v104
    %v141 = vpack.c.b16 %v126, %v125
    %v142 = vpack.c.b16 %v128, %v127
    %v143 = vpack.c.b16 %v130, %v129
    %v144 = vpack.c.b16 %v132, %v131
    %v145 = vpack.c.b16 %v134, %v133
    %v146 = vpack.c.b16 %v136, %v135
    %v147 = vpack.c.b16 %v138, %v137
    %v148 = vpack.c.b16 %v140, %v139
    %157 = vmatpush.bf16.msra.mxu0 %v148
    %158 = vmatpush.bf16.msra.mxu0 %v147
    %159 = vmatpush.bf16.msra.mxu0 %v146
    %160 = vmatpush.bf16.msra.mxu0 %v145
    %161 = vmatpush.bf16.msra.mxu0 %v144
    %162 = vmatpush.bf16.msra.mxu0 %v143
    %163 = vmatpush.bf16.msra.mxu0 %v142
    %164 = vmatpush.bf16.msra.mxu0 %v141
    %165 = vmatmul.bf16.gmra.mxu0 %v88
    %v166 = vpop.f32.mrf.mxu0
    %v167 = vadd.f32 %v107, %v166
    %v168 = vpop.f32.mrf.mxu0
    %169 = vdwg.mxu0
    %v170 = vmax.f32 %v167, 0.0
    %v171 = vpack.c.bf16 %v170, %v170
    %v172 = vld [vmem:[#allocation7] sm:$0xf]
    %v173 = vld [vmem:[#allocation7 + $0x4] sm:$0xf]
    %v174 = vld [vmem:[#allocation7 + $0x8] sm:$0xf]
    %v175 = vld [vmem:[#allocation7 + $0xc] sm:$0xf]
    %v176 = vld [vmem:[#allocation7 + $0x10] sm:$0xf]
    %v177 = vld [vmem:[#allocation7 + $0x14] sm:$0xf]
    %v178 = vld [vmem:[#allocation7 + $0x18] sm:$0xf]
    %v179 = vld [vmem:[#allocation7 + $0x1c] sm:$0xf]
    %v180 = vld [vmem:[#allocation7 + $0x20] sm:$0xf]
    %v181 = vld [vmem:[#allocation7 + $0x24] sm:$0xf]
    %v182 = vld [vmem:[#allocation7 + $0x28] sm:$0xf]
    %v183 = vld [vmem:[#allocation7 + $0x2c] sm:$0xf]
    %v184 = vld [vmem:[#allocation7 + $0x30] sm:$0xf]
    %v185 = vld [vmem:[#allocation7 + $0x34] sm:$0xf]
    %v186 = vld [vmem:[#allocation7 + $0x38] sm:$0xf]
    %v187 = vld [vmem:[#allocation7 + $0x3c] sm:$0xf]
    %v188 = vld [vmem:[%s4] sm:$0x1]
    %v190 = vperm.slane %v188, 0
    %v208 = vunpack.c.l.b16 %v172
    %v209 = vunpack.c.l.b16 %v173
    %v210 = vunpack.c.l.b16 %v174
    %v211 = vunpack.c.l.b16 %v175
    %v212 = vunpack.c.l.b16 %v176
    %v213 = vunpack.c.l.b16 %v177
    %v214 = vunpack.c.l.b16 %v178
    %v215 = vunpack.c.l.b16 %v179
    %v216 = vunpack.c.l.b16 %v180
    %v217 = vunpack.c.l.b16 %v181
    %v218 = vunpack.c.l.b16 %v182
    %v219 = vunpack.c.l.b16 %v183
    %v220 = vunpack.c.l.b16 %v184
    %v221 = vunpack.c.l.b16 %v185
    %v222 = vunpack.c.l.b16 %v186
    %v223 = vunpack.c.l.b16 %v187
    %v224 = vpack.c.b16 %v209, %v208
    %v225 = vpack.c.b16 %v211, %v210
    %v226 = vpack.c.b16 %v213, %v212
    %v227 = vpack.c.b16 %v215, %v214
    %v228 = vpack.c.b16 %v217, %v216
    %v229 = vpack.c.b16 %v219, %v218
    %v230 = vpack.c.b16 %v221, %v220
    %v231 = vpack.c.b16 %v223, %v222
    %240 = vmatpush.bf16.msra.mxu0 %v231
    %241 = vmatpush.bf16.msra.mxu0 %v230
    %242 = vmatpush.bf16.msra.mxu0 %v229
    %243 = vmatpush.bf16.msra.mxu0 %v228
    %244 = vmatpush.bf16.msra.mxu0 %v227
    %245 = vmatpush.bf16.msra.mxu0 %v226
    %246 = vmatpush.bf16.msra.mxu0 %v225
    %247 = vmatpush.bf16.msra.mxu0 %v224
    %248 = vmatmul.bf16.gmra.mxu0 %v171
    %v249 = vpop.f32.mrf.mxu0
    %v250 = vadd.f32 %v190, %v249
    %v251 = vpop.f32.mrf.mxu0
    %252 = vdwg.mxu0
    %v253 = vmax.f32 %v250, 0.0
    %v254 = vpack.c.bf16 %v253, %v253
    %v255 = vld [vmem:[#allocation8] sm:$0xf]
    %v256 = vld [vmem:[#allocation8 + $0x4] sm:$0xf]
    %v257 = vld [vmem:[#allocation8 + $0x8] sm:$0xf]
    %v258 = vld [vmem:[#allocation8 + $0xc] sm:$0xf]
    %v259 = vld [vmem:[#allocation8 + $0x10] sm:$0xf]
    %v260 = vld [vmem:[#allocation8 + $0x14] sm:$0xf]
    %v261 = vld [vmem:[#allocation8 + $0x18] sm:$0xf]
    %v262 = vld [vmem:[#allocation8 + $0x1c] sm:$0xf]
    %v263 = vld [vmem:[#allocation8 + $0x20] sm:$0xf]
    %v264 = vld [vmem:[#allocation8 + $0x24] sm:$0xf]
    %v265 = vld [vmem:[#allocation8 + $0x28] sm:$0xf]
    %v266 = vld [vmem:[#allocation8 + $0x2c] sm:$0xf]
    %v267 = vld [vmem:[#allocation8 + $0x30] sm:$0xf]
    %v268 = vld [vmem:[#allocation8 + $0x34] sm:$0xf]
    %v269 = vld [vmem:[#allocation8 + $0x38] sm:$0xf]
    %v270 = vld [vmem:[#allocation8 + $0x3c] sm:$0xf]
    %v271 = vld [vmem:[%s6] sm:$0x1]
    %v273 = vperm.slane %v271, 0
    %v291 = vunpack.c.l.b16 %v255
    %v292 = vunpack.c.l.b16 %v256
    %v293 = vunpack.c.l.b16 %v257
    %v294 = vunpack.c.l.b16 %v258
    %v295 = vunpack.c.l.b16 %v259
    %v296 = vunpack.c.l.b16 %v260
    %v297 = vunpack.c.l.b16 %v261
    %v298 = vunpack.c.l.b16 %v262
    %v299 = vunpack.c.l.b16 %v263
    %v300 = vunpack.c.l.b16 %v264
    %v301 = vunpack.c.l.b16 %v265
    %v302 = vunpack.c.l.b16 %v266
    %v303 = vunpack.c.l.b16 %v267
    %v304 = vunpack.c.l.b16 %v268
    %v305 = vunpack.c.l.b16 %v269
    %v306 = vunpack.c.l.b16 %v270
    %v307 = vpack.c.b16 %v292, %v291
    %v308 = vpack.c.b16 %v294, %v293
    %v309 = vpack.c.b16 %v296, %v295
    %v310 = vpack.c.b16 %v298, %v297
    %v311 = vpack.c.b16 %v300, %v299
    %v312 = vpack.c.b16 %v302, %v301
    %v313 = vpack.c.b16 %v304, %v303
    %v314 = vpack.c.b16 %v306, %v305
    %323 = vmatpush.bf16.msra.mxu0 %v314
    %324 = vmatpush.bf16.msra.mxu0 %v313
    %325 = vmatpush.bf16.msra.mxu0 %v312
    %326 = vmatpush.bf16.msra.mxu0 %v311
    %327 = vmatpush.bf16.msra.mxu0 %v310
    %328 = vmatpush.bf16.msra.mxu0 %v309
    %329 = vmatpush.bf16.msra.mxu0 %v308
    %330 = vmatpush.bf16.msra.mxu0 %v307
    %331 = vmatmul.bf16.gmra.mxu0 %v254
    %v332 = vpop.f32.mrf.mxu0
    %v333 = vadd.f32 %v273, %v332
    %v334 = vpop.f32.mrf.mxu0
    %335 = vdwg.mxu0
    %336 = vst [vmem:[#allocation10] sm:$0xff] %v333
    // Predicated region
    $region46: #{tpu_custom_call.1} parent=1 // pred_check
      _
    $region47: #{tpu_custom_call.1} parent=1 // pred_check_branch
      %338 = sbr.rel (0) target = $region49
    $region48: #{tpu_custom_call.1} parent=1 // pred_region
      %340 = vsyncadd [#allocation4], 0
      %s342 = sshll.u32 [#allocation10], 4
      %s343 = int_to_ptr.vmem [resolvable:$true] %s342
      %s344 = sshll.u32 %s7, 4
      %s345 = int_to_ptr.hbm [resolvable:$true] %s344
      %347 = dma.vmem_to_hbm [thread:$0]  %s343, 128, %s345, [#allocation4]
    $region49: #{tpu_custom_call.1} parent=1 // pred_fallthru
      _
    // Predicated region
    $region50: #{tpu_custom_call.1} parent=1 // pred_check
      _
    $region51: #{tpu_custom_call.1} parent=1 // pred_check_branch
      %349 = sbr.rel (0) target = $region53
    $region52: #{tpu_custom_call.1} parent=1 // pred_region
      %351 = dma.done [#allocation4], 128
    $region53: #{tpu_custom_call.1} parent=1 // pred_fallthru
      _
    %352 = vsyncpa [#allocation3], 1
    %353 = vsyncpa [#allocation6], 1
    %354 = vsyncpa [#allocation9], 1
    %355 = vsyncpa [#allocation4], 1

</llo_original>
